<compile_context>
chip_gen: v7x
topology: tpu7x:2x2x1
jax: 0.10.0
libtpu: 0.0.40
codegen_flags: <defaults>
</compile_context>

<pallas_src>
import jax
import jax.numpy as jnp
from jax.experimental import pallas as pl
from jax.experimental.pallas import tpu as pltpu


_SUBLANE_PACK = {4: 8, 2: 16, 1: 32}  # itemsize -> packed sublane multiple


def _round_up(x, m):
    return -(-x // m) * m


def _make_kernel(chunk_rows, n_chunks, t):
    """Kernel for one (chunk_rows * n_chunks, t) input block."""

    def kernel(yt_ref, yp_ref, out_ref):
        # (1, t) f32 mask zeroing the wrapped last column of the rolled diffs.
        # Hoisted out of the chunk loop (cheaper than full-tile iota+compare).
        valid = (jax.lax.broadcasted_iota(jnp.int32, (1, t), 1)
                 < (t - 1)).astype(jnp.float32)

        def chunk_body(c, carry):
            row_sq, row_dd, row_mm = carry
            r0 = pl.multiple_of(c * chunk_rows, chunk_rows)
            yt = yt_ref[pl.ds(r0, chunk_rows), :].astype(jnp.float32)
            yp = yp_ref[pl.ds(r0, chunk_rows), :].astype(jnp.float32)

            # --- MSE numerator ---
            diff = yp - yt
            row_sq = row_sq + jnp.sum(diff * diff, axis=0, keepdims=True)

            # --- time-difference terms; roll (XLU slot) keeps everything at
            #     the aligned (chunk_rows, t) shape, wrapped column masked ---
            d_pred = pltpu.roll(yp, shift=t - 1, axis=1) - yp  # x[:,i+1]-x[:,i]
            d_true = pltpu.roll(yt, shift=t - 1, axis=1) - yt
            dd = d_pred - d_true
            row_dd = row_dd + jnp.sum(dd * dd * valid, axis=0, keepdims=True)

            # sign(d_pred) != sign(d_true), without two jnp.sign expansions.
            mism = (d_pred * d_true < 0.0) | ((d_pred == 0.0) ^ (d_true == 0.0))
            row_mm = row_mm + jnp.sum(mism.astype(jnp.float32) * valid,
                                      axis=0, keepdims=True)
            return row_sq, row_dd, row_mm

        zero = jnp.zeros((1, t), jnp.float32)
        row_sq, row_dd, row_mm = jax.lax.fori_loop(
            0, n_chunks, chunk_body, (zero, zero, zero))

        # Single lane-dense (1, 3t) output block: [sq | dd | mismatch].
        out_ref[:, 0:t] = row_sq
        out_ref[:, t:2 * t] = row_dd
        out_ref[:, 2 * t:3 * t] = row_mm

    return kernel


def _choose_tiling(batch, t, dtype, *, block_bytes=8 << 20, chunk_bytes=1 << 20,
                   target_blocks=8):
    """Pick (block_rows, chunk_rows, num_blocks).

    block_rows : rows per grid step (~block_bytes of input per operand),
                 a multiple of chunk_rows.
    chunk_rows : rows per in-kernel loop iteration (bounds f32 temporaries
                 to ~chunk_bytes), a multiple of the packed sublane count.
    """
    itemsize = jnp.dtype(dtype).itemsize
    sub = _SUBLANE_PACK.get(itemsize, 8)
    padded_batch = _round_up(batch, sub)

    # Rows per in-kernel chunk (f32 intermediates ~chunk_bytes).
    chunk_rows = max(sub, (chunk_bytes // (t * 4)) // sub * sub)
    chunk_rows = min(chunk_rows, padded_batch)

    # Rows per grid block (~block_bytes of input per operand per step).
    rows = max(chunk_rows,
               (block_bytes // (t * itemsize)) // chunk_rows * chunk_rows)

    # Prefer >= target_blocks grid steps when the batch allows it, so the DMA
    # pipeline overlaps and both v7x TensorCores get work.
    blocks_possible = max(1, padded_batch // chunk_rows)
    want = min(target_blocks, blocks_possible)
    rows = min(rows, _round_up(_round_up(padded_batch, want) // want,
                               chunk_rows))
    rows = max(chunk_rows, rows)

    num_blocks = _round_up(padded_batch, rows) // rows
    return rows, chunk_rows, num_blocks


def combined_loss(y_true, y_pred, *, block_rows=None, chunk_rows=None):
    """Pallas TPU implementation of CombinedLoss.forward(y_true, y_pred)."""
    assert y_true.shape == y_pred.shape and y_true.ndim == 2
    batch, t = y_true.shape
    if t < 2:
        raise ValueError("CombinedLoss requires at least 2 steps along axis 1")

    itemsize = jnp.dtype(y_true.dtype).itemsize
    sub = _SUBLANE_PACK.get(itemsize, 8)

    if block_rows is None:
        tb, ck, num_blocks = _choose_tiling(batch, t, y_true.dtype)
    else:
        ck = block_rows if chunk_rows is None else chunk_rows
        if block_rows % ck or ck % sub:
            raise ValueError(
                "block_rows must be a multiple of chunk_rows and chunk_rows a "
                f"multiple of the sublane packing ({sub} for {y_true.dtype}).")
        tb = block_rows
        num_blocks = -(-batch // tb)
    n_chunks = tb // ck

    b_pad = num_blocks * tb
    if b_pad != batch:
        # Zero rows contribute nothing to any of the three partial sums.
        pad = ((0, b_pad - batch), (0, 0))
        y_true = jnp.pad(y_true, pad)
        y_pred = jnp.pad(y_pred, pad)

    # VMEM budget derived from the actual tile: 2 inputs x 2 pipeline buffers,
    # double-buffered (1, 3t) output, f32 temporaries bounded by the chunk,
    # plus slack.  Clamped to 64 MiB so sizing stays v7x-safe.
    in_block_bytes = tb * t * itemsize
    out_block_bytes = 3 * t * 4
    interm_bytes = 12 * ck * t * 4
    vmem_limit = (2 * 2 * in_block_bytes + 2 * out_block_bytes
                  + interm_bytes + (4 << 20))
    vmem_limit = int(min(max(vmem_limit, 16 << 20), 64 << 20))

    in_spec = pl.BlockSpec((tb, t), lambda i: (i, 0))
    out_spec = pl.BlockSpec((1, 3 * t), lambda i: (i, 0))

    partials = pl.pallas_call(
        _make_kernel(ck, n_chunks, t),
        out_shape=jax.ShapeDtypeStruct((num_blocks, 3 * t), jnp.float32),
        grid=(num_blocks,),
        in_specs=[in_spec, in_spec],
        out_specs=out_spec,
        compiler_params=pltpu.CompilerParams(
            dimension_semantics=("parallel",),
            vmem_limit_bytes=vmem_limit,
        ),
    )(y_true, y_pred)

    # Tiny epilogue: collapse the lane-shaped partials and combine into the
    # scalar.  Divisors use the true (unpadded) element counts.
    sums = partials.reshape(num_blocks, 3, t).sum(axis=(0, 2))
    n = batch * t
    n_diff = batch * (t - 1)
    mse = sums[0] / n
    l_d = sums[1] / n_diff
    rho = sums[2] / n_diff
    return rho * mse + (1.0 - rho) * l_d


def combined_loss_ref(y_true, y_pred):
    """Pure-JAX reference of the PyTorch forward (for correctness check)."""
    y_true = y_true.astype(jnp.float32)
    y_pred = y_pred.astype(jnp.float32)
    mse = jnp.mean((y_pred - y_true) ** 2)
    d_pred = y_pred[:, 1:] - y_pred[:, :-1]
    d_true = y_true[:, 1:] - y_true[:, :-1]
    l_d = jnp.mean((d_pred - d_true) ** 2)
    rho = jnp.mean((jnp.sign(d_pred) != jnp.sign(d_true)).astype(jnp.float32))
    return rho * mse + (1.0 - rho) * l_d


if __name__ == "__main__":
    key = jax.random.PRNGKey(0)
    k1, k2, k3, k4, k5, k6 = jax.random.split(key, 6)

    loss_fn = jax.jit(combined_loss, static_argnames=("block_rows", "chunk_rows"))

    # Case 1: auto tiling, single block / single chunk (batch=8, time=128).
    yt1 = jax.random.normal(k1, (8, 128), dtype=jnp.float32)
    yp1 = yt1 + 0.1 * jax.random.normal(k2, (8, 128), dtype=jnp.float32)
    loss1 = loss_fn(yt1, yp1)
    jax.block_until_ready(loss1)
    ref1 = combined_loss_ref(yt1, yp1)
    assert jnp.allclose(loss1, ref1, rtol=1e-5, atol=1e-6), (loss1, ref1)

    # Case 2: multi-block grid with batch padding (batch=20, tile=8 -> 3 blocks).
    yt2 = jax.random.normal(k3, (20, 256), dtype=jnp.float32)
    yp2 = yt2 + 0.1 * jax.random.normal(k4, (20, 256), dtype=jnp.float32)
    loss2 = loss_fn(yt2, yp2, block_rows=8)
    jax.block_until_ready(loss2)
    ref2 = combined_loss_ref(yt2, yp2)
    assert jnp.allclose(loss2, ref2, rtol=1e-5, atol=1e-6), (loss2, ref2)

    # Case 3: multi-block AND multi-chunk inner loop (3 blocks x 2 chunks).
    yt3 = jax.random.normal(k5, (48, 128), dtype=jnp.float32)
    yp3 = yt3 + 0.1 * jax.random.normal(k6, (48, 128), dtype=jnp.float32)
    loss3 = loss_fn(yt3, yp3, block_rows=16, chunk_rows=8)
    jax.block_until_ready(loss3)
    ref3 = combined_loss_ref(yt3, yp3)
    assert jnp.allclose(loss3, ref3, rtol=1e-5, atol=1e-6), (loss3, ref3)

    print("KERNEL_OK")
</pallas_src>

<mosaic_0001>
module attributes {stable_mosaic.version = 11 : i64} {
  func.func @kernel(%arg0: i32, %arg1: memref<8x128xf32, #tpu.memory_space<vmem>>, %arg2: memref<8x128xf32, #tpu.memory_space<vmem>>, %arg3: memref<1x384xf32, #tpu.memory_space<vmem>>) attributes {dimension_semantics = [#tpu.dimension_semantics<parallel>], iteration_bounds = array<i64: 1>, scalar_prefetch = 0 : i64, scratch_operands = 0 : i64, tpu.core_type = #tpu.core_type<tc>, window_params = [{transform_indices = @transform_0, window_bounds = array<i64: 8, 128>}, {transform_indices = @transform_1, window_bounds = array<i64: 8, 128>}, {transform_indices = @transform_2, window_bounds = array<i64: 1, 384>}]} {
    %0 = tpu.iota {dimensions = array<i32: 1>} : vector<1x128xi32>
    %c127_i32 = arith.constant 127 : i32
    %1 = vector.broadcast %c127_i32 : i32 to vector<1x128xi32>
    %2 = arith.cmpi slt, %0, %1 : vector<1x128xi32>
    %3 = arith.extui %2 : vector<1x128xi1> to vector<1x128xi32>
    %4 = arith.sitofp %3 : vector<1x128xi32> to vector<1x128xf32>
    %cst = arith.constant 0.000000e+00 : f32
    %5 = vector.broadcast %cst : f32 to vector<1x128xf32>
    %c0_i32 = arith.constant 0 : i32
    %c8_i32 = arith.constant 8 : i32
    %6 = arith.muli %c0_i32, %c8_i32 : i32
    %7 = tpu.assume_multiple %6, 8 : i32
    %8 = arith.index_cast %7 : i32 to index
    %c0 = arith.constant 0 : index
    %9 = vector.load %arg1[%8, %c0] : memref<8x128xf32, #tpu.memory_space<vmem>>, vector<8x128xf32>
    %10 = arith.index_cast %7 : i32 to index
    %c0_0 = arith.constant 0 : index
    %11 = vector.load %arg2[%10, %c0_0] : memref<8x128xf32, #tpu.memory_space<vmem>>, vector<8x128xf32>
    %12 = arith.subf %11, %9 : vector<8x128xf32>
    %13 = arith.mulf %12, %12 : vector<8x128xf32>
    %cst_1 = arith.constant dense<0.000000e+00> : vector<128xf32>
    %14 = vector.multi_reduction <add>, %13, %cst_1 [0] : vector<8x128xf32> to vector<128xf32>
    %15 = vector.shape_cast %14 : vector<128xf32> to vector<1x128xf32>
    %16 = arith.addf %5, %15 : vector<1x128xf32>
    %c127_i32_2 = arith.constant 127 : i32
    %17 = tpu.dynamic_rotate %11 by %c127_i32_2 dim 1 : vector<8x128xf32>, i32 -> vector<8x128xf32>
    %18 = arith.subf %17, %11 : vector<8x128xf32>
    %c127_i32_3 = arith.constant 127 : i32
    %19 = tpu.dynamic_rotate %9 by %c127_i32_3 dim 1 : vector<8x128xf32>, i32 -> vector<8x128xf32>
    %20 = arith.subf %19, %9 : vector<8x128xf32>
    %21 = arith.subf %18, %20 : vector<8x128xf32>
    %22 = arith.mulf %21, %21 : vector<8x128xf32>
    %23 = vector.broadcast %4 : vector<1x128xf32> to vector<8x128xf32>
    %24 = arith.mulf %22, %23 : vector<8x128xf32>
    %cst_4 = arith.constant dense<0.000000e+00> : vector<128xf32>
    %25 = vector.multi_reduction <add>, %24, %cst_4 [0] : vector<8x128xf32> to vector<128xf32>
    %26 = vector.shape_cast %25 : vector<128xf32> to vector<1x128xf32>
    %27 = arith.addf %5, %26 : vector<1x128xf32>
    %28 = arith.mulf %18, %20 : vector<8x128xf32>
    %cst_5 = arith.constant 0.000000e+00 : f32
    %29 = vector.broadcast %cst_5 : f32 to vector<8x128xf32>
    %30 = arith.cmpf olt, %28, %29 : vector<8x128xf32>
    %cst_6 = arith.constant 0.000000e+00 : f32
    %31 = vector.broadcast %cst_6 : f32 to vector<8x128xf32>
    %32 = arith.cmpf oeq, %18, %31 : vector<8x128xf32>
    %cst_7 = arith.constant 0.000000e+00 : f32
    %33 = vector.broadcast %cst_7 : f32 to vector<8x128xf32>
    %34 = arith.cmpf oeq, %20, %33 : vector<8x128xf32>
    %35 = arith.xori %32, %34 : vector<8x128xi1>
    %36 = arith.ori %30, %35 : vector<8x128xi1>
    %37 = arith.extui %36 : vector<8x128xi1> to vector<8x128xi32>
    %38 = arith.sitofp %37 : vector<8x128xi32> to vector<8x128xf32>
    %39 = vector.broadcast %4 : vector<1x128xf32> to vector<8x128xf32>
    %40 = arith.mulf %38, %39 : vector<8x128xf32>
    %cst_8 = arith.constant dense<0.000000e+00> : vector<128xf32>
    %41 = vector.multi_reduction <add>, %40, %cst_8 [0] : vector<8x128xf32> to vector<128xf32>
    %42 = vector.shape_cast %41 : vector<128xf32> to vector<1x128xf32>
    %43 = arith.addf %5, %42 : vector<1x128xf32>
    %c1_i32 = arith.constant 1 : i32
    %c0_9 = arith.constant 0 : index
    %c0_10 = arith.constant 0 : index
    %44 = vector.load %arg3[%c0_9, %c0_10] : memref<1x384xf32, #tpu.memory_space<vmem>>, vector<1x128xf32>
    tpu.vector_store %arg3[%c0_9, %c0_10], %16 {strides = array<i32>} : memref<1x384xf32, #tpu.memory_space<vmem>>, vector<1x128xf32>,
    %c0_11 = arith.constant 0 : index
    %c128 = arith.constant 128 : index
    %45 = vector.load %arg3[%c0_11, %c128] : memref<1x384xf32, #tpu.memory_space<vmem>>, vector<1x128xf32>
    tpu.vector_store %arg3[%c0_11, %c128], %27 {strides = array<i32>} : memref<1x384xf32, #tpu.memory_space<vmem>>, vector<1x128xf32>,
    %c0_12 = arith.constant 0 : index
    %c256 = arith.constant 256 : index
    %46 = vector.load %arg3[%c0_12, %c256] : memref<1x384xf32, #tpu.memory_space<vmem>>, vector<1x128xf32>
    tpu.vector_store %arg3[%c0_12, %c256], %43 {strides = array<i32>} : memref<1x384xf32, #tpu.memory_space<vmem>>, vector<1x128xf32>,
    return
  }
  func.func @transform_0(%arg0: i32) -> (i32, i32) {
    %c0_i32 = arith.constant 0 : i32
    %c0_i32_0 = arith.constant 0 : i32
    return %arg0, %c0_i32 : i32, i32
  }
  func.func @transform_1(%arg0: i32) -> (i32, i32) {
    %c0_i32 = arith.constant 0 : i32
    %c0_i32_0 = arith.constant 0 : i32
    return %arg0, %c0_i32 : i32, i32
  }
  func.func @transform_2(%arg0: i32) -> (i32, i32) {
    %c0_i32 = arith.constant 0 : i32
    %c0_i32_0 = arith.constant 0 : i32
    return %arg0, %c0_i32 : i32, i32
  }
}

</mosaic_0001>

<llo_original>
// kernel: combined_loss.1
$region0: #{combined_loss.1}
  #allocation0 [shape = 'u32[]', space=smem, size = 0x4, offset = 0x4, fixed_abs, tag = 'smem constant byte address 0x4 - core index']
  #allocation1 [shape = 'u32[144,128]{1,0:T(1,128)}', space=vmem, size = 0x12000, scoped, tag = 'internal scratch']
  %s0 = inlined_call_operand.hbm [shape: f32[8,128], index: 0, kind: input, shape index: {}]
  %s1 = inlined_call_operand.hbm [shape: f32[8,128], index: 1, kind: input, shape index: {}]
  %s2 = inlined_call_operand.vmem [shape: f32[1,384], index: 2, kind: output, shape index: {}]
  %s3 = sld [smem:[#allocation0]]
  $region26: #{combined_loss.1} parent=0
    _
  %s5 = ssub.s32 1, %s3
  %s6 = scalar_select 0, %s5, %s3
  $region1: #{combined_loss.1} parent=0
    #allocation2 [shape = 'u8[4096]{0}', space=vmem, size = 0x1000, scoped, tag = 'input window, operand 0, single buffered']
    #allocation3 [shape = 's32[1]{0}', space=sflag, size = 0x4, scoped, tag = 'scoped memory for combined_loss.1']
    #allocation4 [shape = 'u8[4096]{0}', space=vmem, size = 0x1000, scoped, tag = 'input window, operand 1, single buffered']
    #allocation5 [shape = 's32[1]{0}', space=sflag, size = 0x4, scoped, tag = 'scoped memory for combined_loss.1']
    %7 = vsyncpa [#allocation3], 0
    %8 = vsyncpa [#allocation5], 0
    // Predicated region
    $region2: #{combined_loss.1} parent=1 // pred_check
      _
    $region3: #{combined_loss.1} parent=1 // pred_check_branch
      %10 = sbr.rel (0) target = $region5
    $region4: #{combined_loss.1} parent=1 // pred_region
      %s12 = ssub.s32 128, 128
      %13 = vsyncadd [#allocation3], %s12
      %s15 = sshll.u32 [#allocation2], 4
      %s16 = int_to_ptr.vmem [resolvable:$true] %s15
      %18 = dma.hbm_to_vmem [thread:$0]  %s0, 128, %s16, [#allocation3]
    $region5: #{combined_loss.1} parent=1 // pred_fallthru
      _
    // Predicated region
    $region6: #{combined_loss.1} parent=1 // pred_check
      _
    $region7: #{combined_loss.1} parent=1 // pred_check_branch
      %20 = sbr.rel (0) target = $region9
    $region8: #{combined_loss.1} parent=1 // pred_region
      %s22 = ssub.s32 128, 128
      %23 = vsyncadd [#allocation5], %s22
      %s25 = sshll.u32 [#allocation4], 4
      %s26 = int_to_ptr.vmem [resolvable:$true] %s25
      %28 = dma.hbm_to_vmem [thread:$0]  %s1, 128, %s26, [#allocation5]
    $region9: #{combined_loss.1} parent=1 // pred_fallthru
      _
    // Predicated region
    $region10: #{combined_loss.1} parent=1 // pred_check
      _
    $region11: #{combined_loss.1} parent=1 // pred_check_branch
      %30 = sbr.rel (0) target = $region13
    $region12: #{combined_loss.1} parent=1 // pred_region
      %31 = dma.done [#allocation3], 128
    $region13: #{combined_loss.1} parent=1 // pred_fallthru
      _
    // Predicated region
    $region14: #{combined_loss.1} parent=1 // pred_check
      _
    $region15: #{combined_loss.1} parent=1 // pred_check_branch
      %33 = sbr.rel (0) target = $region17
    $region16: #{combined_loss.1} parent=1 // pred_region
      %34 = dma.done [#allocation5], 128
    $region17: #{combined_loss.1} parent=1 // pred_fallthru
      _
    %v35 = vlaneseq
    %v36 = vand.u32 %v35, 127
    %vm37 = vcmp.lt.s32.totalorder %v36, 127
    %v38 = vsel %vm37, 1, 0
    %v39 = vcvt.s32.f32 %v38
    %v40 = vld [vmem:[#allocation2] sm:$0xff]
    %v41 = vld [vmem:[#allocation4] sm:$0xff]
    %v42 = vsub.f32 %v41, %v40
    %v43 = vmul.f32 %v42, %v42
    %v44 = vrot.slane %v43, 4
    %v45 = vadd.f32 %v43, %v44
    %v46 = vrot.slane %v45, 2
    %v47 = vadd.f32 %v45, %v46
    %v48 = vrot.slane %v47, 1
    %v49 = vadd.f32 %v47, %v48
    %v50 = vadd.f32 %v49, 0.0
    %51 = vrot.lane.b32.xlu0 %v41, 127
    %v52 = vpop.permute.xlu0 %51
    %v53 = vsub.f32 %v52, %v41
    %54 = vrot.lane.b32.xlu0 %v40, 127
    %v55 = vpop.permute.xlu0 %54
    %v56 = vsub.f32 %v55, %v40
    %v57 = vsub.f32 %v53, %v56
    %v58 = vmul.f32 %v57, %v57
    %v59 = vmul.f32 %v58, %v39
    %v60 = vrot.slane %v59, 4
    %v61 = vadd.f32 %v59, %v60
    %v62 = vrot.slane %v61, 2
    %v63 = vadd.f32 %v61, %v62
    %v64 = vrot.slane %v63, 1
    %v65 = vadd.f32 %v63, %v64
    %v66 = vadd.f32 %v65, 0.0
    %v67 = vmul.f32 %v53, %v56
    %vm68 = vcmp.lt.f32.partialorder %v67, 0.0
    %vm69 = vcmp.eq.f32.partialorder %v53, 0.0
    %vm70 = vcmp.eq.f32.partialorder %v56, 0.0
    %vm71 = vmxor %vm69, %vm70
    %vm72 = vmor %vm68, %vm71
    %v73 = vsel %vm72, 1, 0
    %v74 = vcvt.s32.f32 %v73
    %v75 = vmul.f32 %v74, %v39
    %v76 = vrot.slane %v75, 4
    %v77 = vadd.f32 %v75, %v76
    %v78 = vrot.slane %v77, 2
    %v79 = vadd.f32 %v77, %v78
    %v80 = vrot.slane %v79, 1
    %v81 = vadd.f32 %v79, %v80
    %v82 = vadd.f32 %v81, 0.0
    %v83 = vlaneseq
    %vm84 = vcmp.ge.s32.totalorder %v83, 0
    %vm85 = vcmp.lt.s32.totalorder %v83, 128
    %vm86 = vmand %vm84, %vm85
    %87 = vst.msk [vmem:[%s2] sm:$0x1] %vm86, %v50
    %88 = vst.msk [vmem:[%s2 + $0x1] sm:$0x1] %vm86, %v66
    %89 = vst.msk [vmem:[%s2 + $0x2] sm:$0x1] %vm86, %v82
    // Predicated region
    $region18: #{combined_loss.1} parent=1 // pred_check
      _
    $region19: #{combined_loss.1} parent=1 // pred_check_branch
      %91 = sbr.rel (0) target = $region21
    $region20: #{combined_loss.1} parent=1 // pred_region
      _
    $region21: #{combined_loss.1} parent=1 // pred_fallthru
      _
    // Predicated region
    $region22: #{combined_loss.1} parent=1 // pred_check
      _
    $region23: #{combined_loss.1} parent=1 // pred_check_branch
      %93 = sbr.rel (0) target = $region25
    $region24: #{combined_loss.1} parent=1 // pred_region
      _
    $region25: #{combined_loss.1} parent=1 // pred_fallthru
      _
    %94 = vsyncpa [#allocation3], 1
    %95 = vsyncpa [#allocation5], 1

</llo_original>
